<compile_context>
chip_gen: v7x
topology: tpu7x:2x2x1
jax: 0.10.0
libtpu: 0.0.40
codegen_flags: <defaults>
</compile_context>

<pallas_src>
import functools

import jax
import jax.numpy as jnp
from jax.experimental import pallas as pl
from jax.experimental.pallas import tpu as pltpu


def _tcn_residual_kernel(*refs, K, dilation, Lpad, active2, use_downsample, cdtype):
    """One batch-segment block (C, b_tile*Lpad) per grid step.

    refs (use_downsample=True):
        x_ref (C_in, n), w1_ref (K, C_out, C_in), b1_ref (C_out, 1),
        w2_ref (K, C_out, C_out), b2_ref (C_out, 1),
        wd_ref (C_out, C_in), bd_ref (C_out, 1), out_ref (C_out, n)
    refs (identity residual): same without wd_ref / bd_ref.
    """
    if use_downsample:
        x_ref, w1_ref, b1_ref, w2_ref, b2_ref, wd_ref, bd_ref, out_ref = refs
    else:
        x_ref, w1_ref, b1_ref, w2_ref, b2_ref, out_ref = refs
        wd_ref = bd_ref = None

    x = x_ref[...]                                   # (C_in, n), compute dtype
    n = x.shape[-1]
    x_f32 = x.astype(jnp.float32)

    # Lane position within each length-Lpad batch segment.  The causal mask for
    # a tap shifted right by s zeroes lanes with local position < s; this also
    # kills the roll wrap-around across segment / block boundaries.
    pos = jax.lax.broadcasted_iota(jnp.int32, (1, n), 1) % Lpad

    def causal_conv(inp_cd, inp_f32, w_ref, b_ref):
        # Tap K-1 needs no shift; tap k < K-1 is the input shifted right by
        # (K-1-k)*dilation with zeros entering on the left.  Each tap is its own
        # MXU matmul accumulated in f32 (no im2col concat, no scratch buffer).
        acc = jnp.dot(w_ref[K - 1], inp_cd, preferred_element_type=jnp.float32)
        for k in range(K - 1):
            s = (K - 1 - k) * dilation
            tap = pltpu.roll(inp_f32, shift=s, axis=1)          # XLU lane rotate
            tap = jnp.where(pos >= s, tap, 0.0)                 # causal zero head
            acc += jnp.dot(w_ref[k], tap.astype(cdtype),
                           preferred_element_type=jnp.float32)
        return acc + b_ref[...]

    # ---- tcn1: conv -> ReLU --------------------------------------------------
    # TODO(synk): nn.Dropout treated as identity (eval-mode semantics).
    h = jnp.maximum(causal_conv(x, x_f32, w1_ref, b1_ref), 0.0)

    # ---- tcn2: conv -> ReLU iff active (not last) -----------------------------
    o = causal_conv(h.astype(cdtype), h, w2_ref, b2_ref)
    if active2:
        o = jnp.maximum(o, 0.0)

    # ---- residual --------------------------------------------------------------
    if use_downsample:
        o = o + jnp.dot(wd_ref[...], x, preferred_element_type=jnp.float32) + bd_ref[...]
    else:
        o = o + x_f32                                 # C_in == C_out

    out_ref[...] = o.astype(out_ref.dtype)


def _weight_norm(v, g):
    """Effective Conv1d weight for torch.nn.utils.weight_norm (dim=0)."""
    norm = jnp.sqrt(jnp.sum(v * v, axis=(1, 2), keepdims=True))
    return g * v / norm


def tcn_residual_block(x, params, *, kernel_size, stride, dilation, last=False,
                       compute_dtype=jnp.float32):
    """Forward pass of TCN_residual_block.  x: (B, C_in, L) float32."""
    assert stride == 1, "TCN residual block requires stride=1 (residual add needs matching length)"
    B, C_in, L = x.shape
    K = kernel_size
    Lpad = ((L + 127) // 128) * 128               # lane-dense segment width

    # Fold weight norm in f32, then reorder tap-major: w[k] is the (C_out, C_*)
    # weight matrix of tap k.
    w1 = _weight_norm(params["v1"], params["g1"])             # (C_out, C_in, K)
    w2 = _weight_norm(params["v2"], params["g2"])             # (C_out, C_out, K)
    C_out = w1.shape[0]
    w1t = jnp.transpose(w1, (2, 0, 1)).astype(compute_dtype)  # (K, C_out, C_in)
    w2t = jnp.transpose(w2, (2, 0, 1)).astype(compute_dtype)  # (K, C_out, C_out)
    b1 = params["b1"].astype(jnp.float32)[:, None]            # (C_out, 1)
    b2 = params["b2"].astype(jnp.float32)[:, None]

    active2 = not last
    use_downsample = (C_in != C_out)
    if use_downsample:
        wd = params["wd"][:, :, 0].astype(compute_dtype)      # (C_out, C_in)
        bd = params["bd"].astype(jnp.float32)[:, None]

    # Batch-segment tiling: each grid step handles b_tile segments stacked along
    # the lane/N dim, so the matmul N-dim is b_tile * Lpad (wide, lane-dense).
    itemsize = jnp.dtype(compute_dtype).itemsize
    seg_bytes = Lpad * max(C_in, C_out) * max(itemsize, 4)
    b_tile = max(1, min(B, (4 << 20) // max(seg_bytes, 1)))   # ~4 MiB activation block
    Bpad = ((B + b_tile - 1) // b_tile) * b_tile
    n_blk = b_tile * Lpad
    Npad = Bpad * Lpad
    num_blocks = Bpad // b_tile

    # Lane-dense repack (B, C_in, L) -> (C_in, Bpad*Lpad); right-pad only, the
    # causal left-pad is applied inside the kernel via masks.
    # TODO(synk): in a full TCN stack keep activations in this (C, N) layout
    # across blocks instead of repacking around every residual block.
    xp = jnp.pad(x, ((0, Bpad - B), (0, 0), (0, Lpad - L)))
    x2d = jnp.transpose(xp, (1, 0, 2)).reshape(C_in, Npad).astype(compute_dtype)

    args = [x2d, w1t, b1, w2t, b2]
    in_specs = [
        pl.BlockSpec((C_in, n_blk), lambda i: (0, i)),          # activations
        pl.BlockSpec(w1t.shape, lambda i: (0, 0, 0)),           # conv1 taps
        pl.BlockSpec(b1.shape, lambda i: (0, 0)),               # conv1 bias
        pl.BlockSpec(w2t.shape, lambda i: (0, 0, 0)),           # conv2 taps
        pl.BlockSpec(b2.shape, lambda i: (0, 0)),               # conv2 bias
    ]
    if use_downsample:
        args += [wd, bd]
        in_specs += [pl.BlockSpec(wd.shape, lambda i: (0, 0)),  # 1x1 downsample weight
                     pl.BlockSpec(bd.shape, lambda i: (0, 0))]  # 1x1 downsample bias

    kernel = functools.partial(
        _tcn_residual_kernel,
        K=K, dilation=dilation, Lpad=Lpad, active2=active2,
        use_downsample=use_downsample, cdtype=compute_dtype,
    )

    # Raise the scoped-VMEM limit only once blocks outgrow the default.
    act_bytes = (C_in * itemsize + C_out * 4) * n_blk
    vmem_est = 2 * act_bytes + 8 * max(C_in, C_out) * n_blk * 4
    compiler_kwargs = dict(dimension_semantics=("parallel",))
    if vmem_est > (32 << 20):
        compiler_kwargs["vmem_limit_bytes"] = int(min(vmem_est + (8 << 20), 64 << 20))

    out2d = pl.pallas_call(
        kernel,
        out_shape=jax.ShapeDtypeStruct((C_out, Npad), jnp.float32),
        grid=(num_blocks,),
        in_specs=in_specs,
        out_specs=pl.BlockSpec((C_out, n_blk), lambda i: (0, i)),
        compiler_params=pltpu.CompilerParams(**compiler_kwargs),
    )(*args)

    out = out2d.reshape(C_out, Bpad, Lpad)
    return jnp.transpose(out, (1, 0, 2))[:B, :, :L]


# ----------------------------- pure-JAX reference ---------------------------
def _conv1d_ref(x, w, b, dilation):
    pad = (w.shape[-1] - 1) * dilation
    y = jax.lax.conv_general_dilated(
        x, w, window_strides=(1,), padding=[(pad, 0)],
        rhs_dilation=(dilation,), dimension_numbers=("NCH", "OIH", "NCH"))
    return y + b[None, :, None]


def _reference(x, params, *, kernel_size, stride, dilation, last=False):
    w1 = _weight_norm(params["v1"], params["g1"])
    w2 = _weight_norm(params["v2"], params["g2"])
    h = jax.nn.relu(_conv1d_ref(x, w1, params["b1"], dilation))
    o = _conv1d_ref(h, w2, params["b2"], dilation)
    if not last:
        o = jax.nn.relu(o)
    if x.shape[1] != w1.shape[0]:
        res = _conv1d_ref(x, params["wd"], params["bd"], 1)
    else:
        res = x
    return o + res


# ------------------------------------ main ----------------------------------
if __name__ == "__main__":
    kernel_size, stride, dilation = 3, 1, 2
    B, L = 2, 16

    def make_params(key, c_in, c_out, k):
        ks = jax.random.split(key, 8)
        p = dict(
            v1=0.01 * jax.random.normal(ks[0], (c_out, c_in, k), jnp.float32),
            g1=1.0 + 0.1 * jax.random.normal(ks[1], (c_out, 1, 1), jnp.float32),
            b1=0.01 * jax.random.normal(ks[2], (c_out,), jnp.float32),
            v2=0.01 * jax.random.normal(ks[3], (c_out, c_out, k), jnp.float32),
            g2=1.0 + 0.1 * jax.random.normal(ks[4], (c_out, 1, 1), jnp.float32),
            b2=0.01 * jax.random.normal(ks[5], (c_out,), jnp.float32),
        )
        if c_in != c_out:
            p["wd"] = 0.01 * jax.random.normal(ks[6], (c_out, c_in, 1), jnp.float32)
            p["bd"] = 0.01 * jax.random.normal(ks[7], (c_out,), jnp.float32)
        return p

    key = jax.random.PRNGKey(0)

    # (C_in, C_out, last) -> exercises the downsample / fused-into-acc / identity
    # residual paths with and without the trailing ReLU.
    cases = [(4, 8, False), (4, 8, True), (8, 8, False)]
    for idx, (c_in, c_out, last) in enumerate(cases):
        kp = jax.random.fold_in(key, 2 * idx)
        kx = jax.random.fold_in(key, 2 * idx + 1)
        params = make_params(kp, c_in, c_out, kernel_size)
        x = jax.random.normal(kx, (B, c_in, L), jnp.float32)

        ref = _reference(x, params, kernel_size=kernel_size, stride=stride,
                         dilation=dilation, last=last)

        for cdtype, atol, rtol in ((jnp.float32, 1e-5, 1e-5),
                                   (jnp.bfloat16, 5e-2, 5e-2)):
            out = tcn_residual_block(x, params, kernel_size=kernel_size, stride=stride,
                                     dilation=dilation, last=last, compute_dtype=cdtype)
            out = jax.block_until_ready(out)
            assert out.shape == (B, c_out, L)
            assert jnp.allclose(out, ref, atol=atol, rtol=rtol), (
                f"mismatch vs JAX reference (C_in={c_in}, C_out={c_out}, "
                f"last={last}, dtype={jnp.dtype(cdtype).name})")

    print("KERNEL_OK")
</pallas_src>

<mosaic_0001>
module attributes {stable_mosaic.version = 11 : i64} {
  func.func @_tcn_residual_kernel(%arg0: i32, %arg1: memref<4x256xf32, #tpu.memory_space<vmem>>, %arg2: memref<3x8x4xf32, #tpu.memory_space<vmem>>, %arg3: memref<8x1xf32, #tpu.memory_space<vmem>>, %arg4: memref<3x8x8xf32, #tpu.memory_space<vmem>>, %arg5: memref<8x1xf32, #tpu.memory_space<vmem>>, %arg6: memref<8x4xf32, #tpu.memory_space<vmem>>, %arg7: memref<8x1xf32, #tpu.memory_space<vmem>>, %arg8: memref<8x256xf32, #tpu.memory_space<vmem>>) attributes {dimension_semantics = [#tpu.dimension_semantics<parallel>], iteration_bounds = array<i64: 1>, scalar_prefetch = 0 : i64, scratch_operands = 0 : i64, tpu.core_type = #tpu.core_type<tc>, window_params = [{transform_indices = @transform_0, window_bounds = array<i64: 4, 256>}, {pipeline_mode = #tpu.pipeline_mode<synchronous>, transform_indices = @transform_1, window_bounds = array<i64: 3, 8, 4>}, {pipeline_mode = #tpu.pipeline_mode<synchronous>, transform_indices = @transform_2, window_bounds = array<i64: 8, 1>}, {pipeline_mode = #tpu.pipeline_mode<synchronous>, transform_indices = @transform_3, window_bounds = array<i64: 3, 8, 8>}, {pipeline_mode = #tpu.pipeline_mode<synchronous>, transform_indices = @transform_4, window_bounds = array<i64: 8, 1>}, {pipeline_mode = #tpu.pipeline_mode<synchronous>, transform_indices = @transform_5, window_bounds = array<i64: 8, 4>}, {pipeline_mode = #tpu.pipeline_mode<synchronous>, transform_indices = @transform_6, window_bounds = array<i64: 8, 1>}, {transform_indices = @transform_7, window_bounds = array<i64: 8, 256>}]} {
    %c0 = arith.constant 0 : index
    %c0_0 = arith.constant 0 : index
    %0 = vector.load %arg1[%c0, %c0_0] : memref<4x256xf32, #tpu.memory_space<vmem>>, vector<4x256xf32>
    %1 = tpu.iota {dimensions = array<i32: 1>} : vector<1x256xi32>
    %c128_i32 = arith.constant 128 : i32
    %c0_i32 = arith.constant 0 : i32
    %2 = arith.cmpi eq, %c128_i32, %c0_i32 : i32
    %c1_i32 = arith.constant 1 : i32
    %3 = arith.select %2, %c1_i32, %c128_i32 : i32
    %4 = vector.broadcast %3 : i32 to vector<1x256xi32>
    %5 = arith.remsi %1, %4 : vector<1x256xi32>
    %c0_i32_1 = arith.constant 0 : i32
    %6 = vector.broadcast %c0_i32_1 : i32 to vector<1x256xi32>
    %7 = arith.cmpi ne, %5, %6 : vector<1x256xi32>
    %c0_i32_2 = arith.constant 0 : i32
    %8 = vector.broadcast %c0_i32_2 : i32 to vector<1x256xi32>
    %9 = arith.cmpi slt, %5, %8 : vector<1x256xi32>
    %c0_i32_3 = arith.constant 0 : i32
    %10 = arith.cmpi slt, %3, %c0_i32_3 : i32
    %11 = vector.broadcast %10 : i1 to vector<1x256xi1>
    %12 = vector.broadcast %11 : vector<1x256xi1> to vector<1x256xi1>
    %13 = arith.xori %9, %12 : vector<1x256xi1>
    %14 = arith.andi %13, %7 : vector<1x256xi1>
    %15 = vector.broadcast %3 : i32 to vector<1x256xi32>
    %16 = arith.addi %5, %15 : vector<1x256xi32>
    %17 = arith.select %14, %16, %5 : vector<1x256xi1>, vector<1x256xi32>
    %c2 = arith.constant 2 : index
    %c0_4 = arith.constant 0 : index
    %c0_5 = arith.constant 0 : index
    %18 = vector.load %arg2[%c2, %c0_4, %c0_5] : memref<3x8x4xf32, #tpu.memory_space<vmem>>, vector<1x8x4xf32>
    %19 = vector.shape_cast %18 : vector<1x8x4xf32> to vector<8x4xf32>
    %cst = arith.constant dense<0.000000e+00> : vector<8x256xf32>
    %20 = tpu.matmul %19, %0, %cst {dimension_numbers = #tpu.dot_dimension_numbers<[1], [0], [0], [1], [0, 0, 1, 1], [], []>} : vector<8x4xf32>, vector<4x256xf32>, vector<8x256xf32> -> vector<8x256xf32>
    %c4_i32 = arith.constant 4 : i32
    %21 = tpu.dynamic_rotate %0 by %c4_i32 dim 1 : vector<4x256xf32>, i32 -> vector<4x256xf32>
    %c4_i32_6 = arith.constant 4 : i32
    %22 = vector.broadcast %c4_i32_6 : i32 to vector<1x256xi32>
    %23 = arith.cmpi sge, %17, %22 : vector<1x256xi32>
    %cst_7 = arith.constant 0.000000e+00 : f32
    %24 = vector.shape_cast %23 : vector<1x256xi1> to vector<1x256xi1>
    %25 = vector.broadcast %24 : vector<1x256xi1> to vector<4x256xi1>
    %26 = vector.broadcast %cst_7 : f32 to vector<4x256xf32>
    %27 = arith.select %25, %21, %26 : vector<4x256xi1>, vector<4x256xf32>
    %c0_8 = arith.constant 0 : index
    %c0_9 = arith.constant 0 : index
    %c0_10 = arith.constant 0 : index
    %28 = vector.load %arg2[%c0_8, %c0_9, %c0_10] : memref<3x8x4xf32, #tpu.memory_space<vmem>>, vector<1x8x4xf32>
    %29 = vector.shape_cast %28 : vector<1x8x4xf32> to vector<8x4xf32>
    %cst_11 = arith.constant dense<0.000000e+00> : vector<8x256xf32>
    %30 = tpu.matmul %29, %27, %cst_11 {dimension_numbers = #tpu.dot_dimension_numbers<[1], [0], [0], [1], [0, 0, 1, 1], [], []>} : vector<8x4xf32>, vector<4x256xf32>, vector<8x256xf32> -> vector<8x256xf32>
    %31 = arith.addf %20, %30 : vector<8x256xf32>
    %c2_i32 = arith.constant 2 : i32
    %32 = tpu.dynamic_rotate %0 by %c2_i32 dim 1 : vector<4x256xf32>, i32 -> vector<4x256xf32>
    %c2_i32_12 = arith.constant 2 : i32
    %33 = vector.broadcast %c2_i32_12 : i32 to vector<1x256xi32>
    %34 = arith.cmpi sge, %17, %33 : vector<1x256xi32>
    %cst_13 = arith.constant 0.000000e+00 : f32
    %35 = vector.shape_cast %34 : vector<1x256xi1> to vector<1x256xi1>
    %36 = vector.broadcast %35 : vector<1x256xi1> to vector<4x256xi1>
    %37 = vector.broadcast %cst_13 : f32 to vector<4x256xf32>
    %38 = arith.select %36, %32, %37 : vector<4x256xi1>, vector<4x256xf32>
    %c1 = arith.constant 1 : index
    %c0_14 = arith.constant 0 : index
    %c0_15 = arith.constant 0 : index
    %39 = vector.load %arg2[%c1, %c0_14, %c0_15] : memref<3x8x4xf32, #tpu.memory_space<vmem>>, vector<1x8x4xf32>
    %40 = vector.shape_cast %39 : vector<1x8x4xf32> to vector<8x4xf32>
    %cst_16 = arith.constant dense<0.000000e+00> : vector<8x256xf32>
    %41 = tpu.matmul %40, %38, %cst_16 {dimension_numbers = #tpu.dot_dimension_numbers<[1], [0], [0], [1], [0, 0, 1, 1], [], []>} : vector<8x4xf32>, vector<4x256xf32>, vector<8x256xf32> -> vector<8x256xf32>
    %42 = arith.addf %31, %41 : vector<8x256xf32>
    %c0_17 = arith.constant 0 : index
    %c0_18 = arith.constant 0 : index
    %43 = vector.load %arg3[%c0_17, %c0_18] : memref<8x1xf32, #tpu.memory_space<vmem>>, vector<8x1xf32>
    %44 = vector.broadcast %43 : vector<8x1xf32> to vector<8x256xf32>
    %45 = arith.addf %42, %44 : vector<8x256xf32>
    %cst_19 = arith.constant 0.000000e+00 : f32
    %46 = vector.broadcast %cst_19 : f32 to vector<8x256xf32>
    %47 = arith.maximumf %45, %46 : vector<8x256xf32>
    %c2_20 = arith.constant 2 : index
    %c0_21 = arith.constant 0 : index
    %c0_22 = arith.constant 0 : index
    %48 = vector.load %arg4[%c2_20, %c0_21, %c0_22] : memref<3x8x8xf32, #tpu.memory_space<vmem>>, vector<1x8x8xf32>
    %49 = vector.shape_cast %48 : vector<1x8x8xf32> to vector<8x8xf32>
    %cst_23 = arith.constant dense<0.000000e+00> : vector<8x256xf32>
    %50 = tpu.matmul %49, %47, %cst_23 {dimension_numbers = #tpu.dot_dimension_numbers<[1], [0], [0], [1], [0, 0, 1, 1], [], []>} : vector<8x8xf32>, vector<8x256xf32>, vector<8x256xf32> -> vector<8x256xf32>
    %c4_i32_24 = arith.constant 4 : i32
    %51 = tpu.dynamic_rotate %47 by %c4_i32_24 dim 1 : vector<8x256xf32>, i32 -> vector<8x256xf32>
    %c4_i32_25 = arith.constant 4 : i32
    %52 = vector.broadcast %c4_i32_25 : i32 to vector<1x256xi32>
    %53 = arith.cmpi sge, %17, %52 : vector<1x256xi32>
    %cst_26 = arith.constant 0.000000e+00 : f32
    %54 = vector.shape_cast %53 : vector<1x256xi1> to vector<1x256xi1>
    %55 = vector.broadcast %54 : vector<1x256xi1> to vector<8x256xi1>
    %56 = vector.broadcast %cst_26 : f32 to vector<8x256xf32>
    %57 = arith.select %55, %51, %56 : vector<8x256xi1>, vector<8x256xf32>
    %c0_27 = arith.constant 0 : index
    %c0_28 = arith.constant 0 : index
    %c0_29 = arith.constant 0 : index
    %58 = vector.load %arg4[%c0_27, %c0_28, %c0_29] : memref<3x8x8xf32, #tpu.memory_space<vmem>>, vector<1x8x8xf32>
    %59 = vector.shape_cast %58 : vector<1x8x8xf32> to vector<8x8xf32>
    %cst_30 = arith.constant dense<0.000000e+00> : vector<8x256xf32>
    %60 = tpu.matmul %59, %57, %cst_30 {dimension_numbers = #tpu.dot_dimension_numbers<[1], [0], [0], [1], [0, 0, 1, 1], [], []>} : vector<8x8xf32>, vector<8x256xf32>, vector<8x256xf32> -> vector<8x256xf32>
    %61 = arith.addf %50, %60 : vector<8x256xf32>
    %c2_i32_31 = arith.constant 2 : i32
    %62 = tpu.dynamic_rotate %47 by %c2_i32_31 dim 1 : vector<8x256xf32>, i32 -> vector<8x256xf32>
    %c2_i32_32 = arith.constant 2 : i32
    %63 = vector.broadcast %c2_i32_32 : i32 to vector<1x256xi32>
    %64 = arith.cmpi sge, %17, %63 : vector<1x256xi32>
    %cst_33 = arith.constant 0.000000e+00 : f32
    %65 = vector.shape_cast %64 : vector<1x256xi1> to vector<1x256xi1>
    %66 = vector.broadcast %65 : vector<1x256xi1> to vector<8x256xi1>
    %67 = vector.broadcast %cst_33 : f32 to vector<8x256xf32>
    %68 = arith.select %66, %62, %67 : vector<8x256xi1>, vector<8x256xf32>
    %c1_34 = arith.constant 1 : index
    %c0_35 = arith.constant 0 : index
    %c0_36 = arith.constant 0 : index
    %69 = vector.load %arg4[%c1_34, %c0_35, %c0_36] : memref<3x8x8xf32, #tpu.memory_space<vmem>>, vector<1x8x8xf32>
    %70 = vector.shape_cast %69 : vector<1x8x8xf32> to vector<8x8xf32>
    %cst_37 = arith.constant dense<0.000000e+00> : vector<8x256xf32>
    %71 = tpu.matmul %70, %68, %cst_37 {dimension_numbers = #tpu.dot_dimension_numbers<[1], [0], [0], [1], [0, 0, 1, 1], [], []>} : vector<8x8xf32>, vector<8x256xf32>, vector<8x256xf32> -> vector<8x256xf32>
    %72 = arith.addf %61, %71 : vector<8x256xf32>
    %c0_38 = arith.constant 0 : index
    %c0_39 = arith.constant 0 : index
    %73 = vector.load %arg5[%c0_38, %c0_39] : memref<8x1xf32, #tpu.memory_space<vmem>>, vector<8x1xf32>
    %74 = vector.broadcast %73 : vector<8x1xf32> to vector<8x256xf32>
    %75 = arith.addf %72, %74 : vector<8x256xf32>
    %cst_40 = arith.constant 0.000000e+00 : f32
    %76 = vector.broadcast %cst_40 : f32 to vector<8x256xf32>
    %77 = arith.maximumf %75, %76 : vector<8x256xf32>
    %c0_41 = arith.constant 0 : index
    %c0_42 = arith.constant 0 : index
    %78 = vector.load %arg6[%c0_41, %c0_42] : memref<8x4xf32, #tpu.memory_space<vmem>>, vector<8x4xf32>
    %cst_43 = arith.constant dense<0.000000e+00> : vector<8x256xf32>
    %79 = tpu.matmul %78, %0, %cst_43 {dimension_numbers = #tpu.dot_dimension_numbers<[1], [0], [0], [1], [0, 0, 1, 1], [], []>} : vector<8x4xf32>, vector<4x256xf32>, vector<8x256xf32> -> vector<8x256xf32>
    %80 = arith.addf %77, %79 : vector<8x256xf32>
    %c0_44 = arith.constant 0 : index
    %c0_45 = arith.constant 0 : index
    %81 = vector.load %arg7[%c0_44, %c0_45] : memref<8x1xf32, #tpu.memory_space<vmem>>, vector<8x1xf32>
    %82 = vector.broadcast %81 : vector<8x1xf32> to vector<8x256xf32>
    %83 = arith.addf %80, %82 : vector<8x256xf32>
    %c0_46 = arith.constant 0 : index
    %c0_47 = arith.constant 0 : index
    %84 = vector.load %arg8[%c0_46, %c0_47] : memref<8x256xf32, #tpu.memory_space<vmem>>, vector<8x256xf32>
    tpu.vector_store %arg8[%c0_46, %c0_47], %83 {strides = array<i32>} : memref<8x256xf32, #tpu.memory_space<vmem>>, vector<8x256xf32>,
    return
  }
  func.func @transform_0(%arg0: i32) -> (i32, i32) {
    %c0_i32 = arith.constant 0 : i32
    %c0_i32_0 = arith.constant 0 : i32
    return %c0_i32, %arg0 : i32, i32
  }
  func.func @transform_1(%arg0: i32) -> (i32, i32, i32) {
    %c0_i32 = arith.constant 0 : i32
    %c0_i32_0 = arith.constant 0 : i32
    %c0_i32_1 = arith.constant 0 : i32
    %c0_i32_2 = arith.constant 0 : i32
    return %c0_i32, %c0_i32_0, %c0_i32_1 : i32, i32, i32
  }
  func.func @transform_2(%arg0: i32) -> (i32, i32) {
    %c0_i32 = arith.constant 0 : i32
    %c0_i32_0 = arith.constant 0 : i32
    %c0_i32_1 = arith.constant 0 : i32
    return %c0_i32, %c0_i32_0 : i32, i32
  }
  func.func @transform_3(%arg0: i32) -> (i32, i32, i32) {
    %c0_i32 = arith.constant 0 : i32
    %c0_i32_0 = arith.constant 0 : i32
    %c0_i32_1 = arith.constant 0 : i32
    %c0_i32_2 = arith.constant 0 : i32
    return %c0_i32, %c0_i32_0, %c0_i32_1 : i32, i32, i32
  }
  func.func @transform_4(%arg0: i32) -> (i32, i32) {
    %c0_i32 = arith.constant 0 : i32
    %c0_i32_0 = arith.constant 0 : i32
    %c0_i32_1 = arith.constant 0 : i32
    return %c0_i32, %c0_i32_0 : i32, i32
  }
  func.func @transform_5(%arg0: i32) -> (i32, i32) {
    %c0_i32 = arith.constant 0 : i32
    %c0_i32_0 = arith.constant 0 : i32
    %c0_i32_1 = arith.constant 0 : i32
    return %c0_i32, %c0_i32_0 : i32, i32
  }
  func.func @transform_6(%arg0: i32) -> (i32, i32) {
    %c0_i32 = arith.constant 0 : i32
    %c0_i32_0 = arith.constant 0 : i32
    %c0_i32_1 = arith.constant 0 : i32
    return %c0_i32, %c0_i32_0 : i32, i32
  }
  func.func @transform_7(%arg0: i32) -> (i32, i32) {
    %c0_i32 = arith.constant 0 : i32
    %c0_i32_0 = arith.constant 0 : i32
    return %c0_i32, %arg0 : i32, i32
  }
}

</mosaic_0001>

<llo_original>
// kernel: tpu_custom_call.1
$region0: #{tpu_custom_call.1}
  #allocation0 [shape = 'u32[]', space=smem, size = 0x4, offset = 0x4, fixed_abs, tag = 'smem constant byte address 0x4 - core index']
  #allocation1 [shape = 'u32[144,128]{1,0:T(1,128)}', space=vmem, size = 0x12000, scoped, tag = 'internal scratch']
  %s0 = inlined_call_operand.vmem [shape: f32[4,256], index: 0, kind: input, shape index: {}]
  %s1 = inlined_call_operand.vmem [shape: f32[3,8,4], index: 1, kind: input, shape index: {}]
  %s2 = inlined_call_operand.vmem [shape: f32[8,1], index: 2, kind: input, shape index: {}]
  %s3 = inlined_call_operand.vmem [shape: f32[3,8,8], index: 3, kind: input, shape index: {}]
  %s4 = inlined_call_operand.vmem [shape: f32[8,1], index: 4, kind: input, shape index: {}]
  %s5 = inlined_call_operand.vmem [shape: f32[8,4], index: 5, kind: input, shape index: {}]
  %s6 = inlined_call_operand.vmem [shape: f32[8,1], index: 6, kind: input, shape index: {}]
  %s7 = inlined_call_operand.hbm [shape: f32[8,256], index: 7, kind: output, shape index: {}]
  %s8 = sld [smem:[#allocation0]]
  $region38: #{tpu_custom_call.1} parent=0
    _
  %s10 = ssub.s32 1, %s8
  %s11 = scalar_select 0, %s10, %s8
  $region1: #{tpu_custom_call.1} parent=0
    #allocation2 [shape = 'u8[8192]{0}', space=vmem, size = 0x2000, scoped, tag = 'output window, operand 0, single buffered']
    #allocation3 [shape = 's32[1]{0}', space=sflag, size = 0x4, scoped, tag = 'scoped memory for tpu_custom_call.1']
    %12 = vsyncpa [#allocation3], 0
    // Predicated region
    $region2: #{tpu_custom_call.1} parent=1 // pred_check
      _
    $region3: #{tpu_custom_call.1} parent=1 // pred_check_branch
      %14 = sbr.rel (0) target = $region5
    $region4: #{tpu_custom_call.1} parent=1 // pred_region
      _
    $region5: #{tpu_custom_call.1} parent=1 // pred_fallthru
      _
    // Predicated region
    $region6: #{tpu_custom_call.1} parent=1 // pred_check
      _
    $region7: #{tpu_custom_call.1} parent=1 // pred_check_branch
      %16 = sbr.rel (0) target = $region9
    $region8: #{tpu_custom_call.1} parent=1 // pred_region
      _
    $region9: #{tpu_custom_call.1} parent=1 // pred_fallthru
      _
    // Predicated region
    $region10: #{tpu_custom_call.1} parent=1 // pred_check
      _
    $region11: #{tpu_custom_call.1} parent=1 // pred_check_branch
      %18 = sbr.rel (0) target = $region13
    $region12: #{tpu_custom_call.1} parent=1 // pred_region
      _
    $region13: #{tpu_custom_call.1} parent=1 // pred_fallthru
      _
    // Predicated region
    $region14: #{tpu_custom_call.1} parent=1 // pred_check
      _
    $region15: #{tpu_custom_call.1} parent=1 // pred_check_branch
      %20 = sbr.rel (0) target = $region17
    $region16: #{tpu_custom_call.1} parent=1 // pred_region
      _
    $region17: #{tpu_custom_call.1} parent=1 // pred_fallthru
      _
    // Predicated region
    $region18: #{tpu_custom_call.1} parent=1 // pred_check
      _
    $region19: #{tpu_custom_call.1} parent=1 // pred_check_branch
      %22 = sbr.rel (0) target = $region21
    $region20: #{tpu_custom_call.1} parent=1 // pred_region
      _
    $region21: #{tpu_custom_call.1} parent=1 // pred_fallthru
      _
    // Predicated region
    $region22: #{tpu_custom_call.1} parent=1 // pred_check
      _
    $region23: #{tpu_custom_call.1} parent=1 // pred_check_branch
      %24 = sbr.rel (0) target = $region25
    $region24: #{tpu_custom_call.1} parent=1 // pred_region
      _
    $region25: #{tpu_custom_call.1} parent=1 // pred_fallthru
      _
    // Predicated region
    $region26: #{tpu_custom_call.1} parent=1 // pred_check
      _
    $region27: #{tpu_custom_call.1} parent=1 // pred_check_branch
      %26 = sbr.rel (0) target = $region29
    $region28: #{tpu_custom_call.1} parent=1 // pred_region
      _
    $region29: #{tpu_custom_call.1} parent=1 // pred_fallthru
      _
    %v27 = vld [vmem:[%s0] sm:$0xff]
    %v28 = vlaneseq
    %v29 = vand.u32 %v28, 127
    %v30 = vadd.s32 %v29, 128
    %vm31 = vcmp.lt.s32.totalorder %v29, 0
    %v32 = vsub.s32 0, %v29
    %v33 = vsel %vm31, %v32, %v29
    %v34 = vshrl.u32 %v33, 7
    %v35 = vand.u32 %v33, 127
    %v36 = vsub.s32 0, %v35
    %v37 = vsel %vm31, %v36, %v35
    %vm38 = vcmp.lt.s32.totalorder %v30, 0
    %v39 = vsub.s32 0, %v30
    %v40 = vsel %vm38, %v39, %v30
    %v41 = vshrl.u32 %v40, 7
    %v42 = vand.u32 %v40, 127
    %v43 = vsub.s32 0, %v42
    %v44 = vsel %vm38, %v43, %v42
    %vm45 = vcmp.ne.s32.totalorder %v37, 0
    %vm46 = vcmp.ne.s32.totalorder %v44, 0
    %vm47 = vcmp.lt.s32.totalorder %v37, 0
    %vm48 = vcmp.lt.s32.totalorder %v44, 0
    %vm49 = vmand %vm47, %vm45
    %vm50 = vmand %vm48, %vm46
    %v51 = vadd.s32 %v37, 128
    %v52 = vadd.s32 %v44, 128
    %v53 = vsel %vm49, %v51, %v37
    %v54 = vsel %vm50, %v52, %v44
    %s55 = scalar_lea.vmem %s1, 16
    %v56 = vld [vmem:[%s55] sm:$0xff]
    %v58 = vcombine.high %v27, %v27
    %60 = vrot.lane.b32.xlu0 %v27, 4
    %v61 = vpop.permute.xlu0 %60
    %62 = vrot.lane.b32.xlu0 %v58, 4
    %v63 = vpop.permute.xlu0 %62
    %vm64 = vcmp.lt.s32.totalorder %v29, 4
    %v65 = vsel %vm64, %v61, %v63
    %v66 = vsel %vm64, %v63, %v61
    %vm67 = vcmp.ge.s32.totalorder %v53, 4
    %vm68 = vcmp.ge.s32.totalorder %v54, 4
    %v69 = vsel %vm67, 1, 0
    %v70 = vsel %vm68, 1, 0
    %vm71 = vcmp.eq.s32.totalorder %v69, 1
    %vm72 = vcmp.eq.s32.totalorder %v70, 1
    %v73 = vsel %vm71, %v66, 0.0
    %v74 = vsel %vm72, %v65, 0.0
    %v75 = vld [vmem:[%s1] sm:$0xff]
    %vm76 = vcmask 31744
    %v78 = vsel %vm76, %v75, 0
    %vm80 = vcmask 1043456
    %v82 = vsel %vm80, %v73, 0
    %v85 = vsel %vm80, %v74, 0
    %87 = vmatprep.subr.mxu0 %v85
    %88 = vmatpush1.msra.mxu0 %v82
    %89 = vmatprep.subr.mxu0 0.0
    %90 = vmatpush1.msra.mxu0 0.0
    %91 = vmatprep.subr.mxu0 0.0
    %92 = vmatpush1.msra.mxu0 0.0
    %93 = vmatprep.subr.mxu0 0.0
    %94 = vmatpush1.msra.mxu0 0.0
    %95 = vmatprep.subr.mxu0 0.0
    %96 = vmatpush1.msra.mxu0 0.0
    %97 = vmatprep.subr.mxu0 0.0
    %98 = vmatpush1.msra.mxu0 0.0
    %99 = vmatprep.subr.mxu0 0.0
    %100 = vmatpush1.msra.mxu0 0.0
    %101 = vmatprep.subr.mxu0 0.0
    %102 = vmatpush1.msra.mxu0 0.0
    %103 = vmatprep.subr.mxu0 0.0
    %104 = vmatpush1.msra.mxu0 0.0
    %105 = vmatprep.subr.mxu0 0.0
    %106 = vmatpush1.msra.mxu0 0.0
    %107 = vmatprep.subr.mxu0 0.0
    %108 = vmatpush1.msra.mxu0 0.0
    %109 = vmatprep.subr.mxu0 0.0
    %110 = vmatpush1.msra.mxu0 0.0
    %111 = vmatprep.subr.mxu0 0.0
    %112 = vmatpush1.msra.mxu0 0.0
    %113 = vmatprep.subr.mxu0 0.0
    %114 = vmatpush1.msra.mxu0 0.0
    %115 = vmatprep.subr.mxu0 0.0
    %116 = vmatpush1.msra.mxu0 0.0
    %117 = vmatprep.subr.mxu0 0.0
    %118 = vmatpush1.msra.mxu0 0.0
    %119 = vmatprep.subr.mxu0 0.0
    %120 = vmatpush1.msra.mxu0 0.0
    %121 = vmatprep.subr.mxu0 0.0
    %122 = vmatpush1.msra.mxu0 0.0
    %123 = vmatprep.subr.mxu0 0.0
    %124 = vmatpush1.msra.mxu0 0.0
    %125 = vmatprep.subr.mxu0 0.0
    %126 = vmatpush1.msra.mxu0 0.0
    %127 = vmatprep.subr.mxu0 0.0
    %128 = vmatpush1.msra.mxu0 0.0
    %129 = vmatprep.subr.mxu0 0.0
    %130 = vmatpush1.msra.mxu0 0.0
    %131 = vmatprep.subr.mxu0 0.0
    %132 = vmatpush1.msra.mxu0 0.0
    %133 = vmatprep.subr.mxu0 0.0
    %134 = vmatpush1.msra.mxu0 0.0
    %135 = vmatprep.subr.mxu0 0.0
    %136 = vmatpush1.msra.mxu0 0.0
    %137 = vmatprep.subr.mxu0 0.0
    %138 = vmatpush1.msra.mxu0 0.0
    %139 = vmatprep.subr.mxu0 0.0
    %140 = vmatpush1.msra.mxu0 0.0
    %141 = vmatprep.subr.mxu0 0.0
    %142 = vmatpush1.msra.mxu0 0.0
    %143 = vmatprep.subr.mxu0 0.0
    %144 = vmatpush1.msra.mxu0 0.0
    %145 = vmatprep.subr.mxu0 0.0
    %146 = vmatpush1.msra.mxu0 0.0
    %147 = vmatprep.subr.mxu0 0.0
    %148 = vmatpush1.msra.mxu0 0.0
    %149 = vmatprep.subr.mxu0 0.0
    %150 = vmatpush1.msra.mxu0 0.0
    %151 = vmatprep.mubr.f32.mxu0 0.0
    %152 = vmatmul.mubr.f32.gmra.mrb[0].mxu0 %v78
    %v153 = vpop.f32.mrb[0].mxu0
    %v154 = vadd.f32 0.0, %v153
    %v155 = vpop.f32.mrb[0].mxu0
    %v156 = vadd.f32 0.0, %v155
    %157 = vdwg.mxu0
    %v159 = vsel %vm76, %v56, 0
    %v161 = vsel %vm80, %v27, 0
    %v163 = vsel %vm80, %v58, 0
    %165 = vmatprep.subr.mxu0 %v163
    %166 = vmatpush1.msra.mxu0 %v161
    %167 = vmatprep.subr.mxu0 0.0
    %168 = vmatpush1.msra.mxu0 0.0
    %169 = vmatprep.subr.mxu0 0.0
    %170 = vmatpush1.msra.mxu0 0.0
    %171 = vmatprep.subr.mxu0 0.0
    %172 = vmatpush1.msra.mxu0 0.0
    %173 = vmatprep.subr.mxu0 0.0
    %174 = vmatpush1.msra.mxu0 0.0
    %175 = vmatprep.subr.mxu0 0.0
    %176 = vmatpush1.msra.mxu0 0.0
    %177 = vmatprep.subr.mxu0 0.0
    %178 = vmatpush1.msra.mxu0 0.0
    %179 = vmatprep.subr.mxu0 0.0
    %180 = vmatpush1.msra.mxu0 0.0
    %181 = vmatprep.subr.mxu0 0.0
    %182 = vmatpush1.msra.mxu0 0.0
    %183 = vmatprep.subr.mxu0 0.0
    %184 = vmatpush1.msra.mxu0 0.0
    %185 = vmatprep.subr.mxu0 0.0
    %186 = vmatpush1.msra.mxu0 0.0
    %187 = vmatprep.subr.mxu0 0.0
    %188 = vmatpush1.msra.mxu0 0.0
    %189 = vmatprep.subr.mxu0 0.0
    %190 = vmatpush1.msra.mxu0 0.0
    %191 = vmatprep.subr.mxu0 0.0
    %192 = vmatpush1.msra.mxu0 0.0
    %193 = vmatprep.subr.mxu0 0.0
    %194 = vmatpush1.msra.mxu0 0.0
    %195 = vmatprep.subr.mxu0 0.0
    %196 = vmatpush1.msra.mxu0 0.0
    %197 = vmatprep.subr.mxu0 0.0
    %198 = vmatpush1.msra.mxu0 0.0
    %199 = vmatprep.subr.mxu0 0.0
    %200 = vmatpush1.msra.mxu0 0.0
    %201 = vmatprep.subr.mxu0 0.0
    %202 = vmatpush1.msra.mxu0 0.0
    %203 = vmatprep.subr.mxu0 0.0
    %204 = vmatpush1.msra.mxu0 0.0
    %205 = vmatprep.subr.mxu0 0.0
    %206 = vmatpush1.msra.mxu0 0.0
    %207 = vmatprep.subr.mxu0 0.0
    %208 = vmatpush1.msra.mxu0 0.0
    %209 = vmatprep.subr.mxu0 0.0
    %210 = vmatpush1.msra.mxu0 0.0
    %211 = vmatprep.subr.mxu0 0.0
    %212 = vmatpush1.msra.mxu0 0.0
    %213 = vmatprep.subr.mxu0 0.0
    %214 = vmatpush1.msra.mxu0 0.0
    %215 = vmatprep.subr.mxu0 0.0
    %216 = vmatpush1.msra.mxu0 0.0
    %217 = vmatprep.subr.mxu0 0.0
    %218 = vmatpush1.msra.mxu0 0.0
    %219 = vmatprep.subr.mxu0 0.0
    %220 = vmatpush1.msra.mxu0 0.0
    %221 = vmatprep.subr.mxu0 0.0
    %222 = vmatpush1.msra.mxu0 0.0
    %223 = vmatprep.subr.mxu0 0.0
    %224 = vmatpush1.msra.mxu0 0.0
    %225 = vmatprep.subr.mxu0 0.0
    %226 = vmatpush1.msra.mxu0 0.0
    %227 = vmatprep.subr.mxu0 0.0
    %228 = vmatpush1.msra.mxu0 0.0
    %229 = vmatprep.mubr.f32.mxu0 0.0
    %230 = vmatmul.mubr.f32.gmra.mrb[0].mxu0 %v159
    %v231 = vpop.f32.mrb[0].mxu0
    %v232 = vadd.f32 %v154, %v231
    %v233 = vpop.f32.mrb[0].mxu0
    %v234 = vadd.f32 %v156, %v233
    %235 = vdwg.mxu0
    %236 = vrot.lane.b32.xlu0 %v27, 2
    %v237 = vpop.permute.xlu0 %236
    %238 = vrot.lane.b32.xlu0 %v58, 2
    %v239 = vpop.permute.xlu0 %238
    %vm240 = vcmp.lt.s32.totalorder %v29, 2
    %v241 = vsel %vm240, %v237, %v239
    %v242 = vsel %vm240, %v239, %v237
    %vm243 = vcmp.ge.s32.totalorder %v53, 2
    %vm244 = vcmp.ge.s32.totalorder %v54, 2
    %v245 = vsel %vm243, 1, 0
    %v246 = vsel %vm244, 1, 0
    %vm247 = vcmp.eq.s32.totalorder %v245, 1
    %vm248 = vcmp.eq.s32.totalorder %v246, 1
    %v249 = vsel %vm247, %v242, 0.0
    %v250 = vsel %vm248, %v241, 0.0
    %s251 = scalar_lea.vmem %s1, 8
    %v252 = vld [vmem:[%s251] sm:$0xff]
    %v254 = vsel %vm76, %v252, 0
    %v257 = vsel %vm80, %v249, 0
    %v260 = vsel %vm80, %v250, 0
    %262 = vmatprep.subr.mxu0 %v260
    %263 = vmatpush1.msra.mxu0 %v257
    %264 = vmatprep.subr.mxu0 0.0
    %265 = vmatpush1.msra.mxu0 0.0
    %266 = vmatprep.subr.mxu0 0.0
    %267 = vmatpush1.msra.mxu0 0.0
    %268 = vmatprep.subr.mxu0 0.0
    %269 = vmatpush1.msra.mxu0 0.0
    %270 = vmatprep.subr.mxu0 0.0
    %271 = vmatpush1.msra.mxu0 0.0
    %272 = vmatprep.subr.mxu0 0.0
    %273 = vmatpush1.msra.mxu0 0.0
    %274 = vmatprep.subr.mxu0 0.0
    %275 = vmatpush1.msra.mxu0 0.0
    %276 = vmatprep.subr.mxu0 0.0
    %277 = vmatpush1.msra.mxu0 0.0
    %278 = vmatprep.subr.mxu0 0.0
    %279 = vmatpush1.msra.mxu0 0.0
    %280 = vmatprep.subr.mxu0 0.0
    %281 = vmatpush1.msra.mxu0 0.0
    %282 = vmatprep.subr.mxu0 0.0
    %283 = vmatpush1.msra.mxu0 0.0
    %284 = vmatprep.subr.mxu0 0.0
    %285 = vmatpush1.msra.mxu0 0.0
    %286 = vmatprep.subr.mxu0 0.0
    %287 = vmatpush1.msra.mxu0 0.0
    %288 = vmatprep.subr.mxu0 0.0
    %289 = vmatpush1.msra.mxu0 0.0
    %290 = vmatprep.subr.mxu0 0.0
    %291 = vmatpush1.msra.mxu0 0.0
    %292 = vmatprep.subr.mxu0 0.0
    %293 = vmatpush1.msra.mxu0 0.0
    %294 = vmatprep.subr.mxu0 0.0
    %295 = vmatpush1.msra.mxu0 0.0
    %296 = vmatprep.subr.mxu0 0.0
    %297 = vmatpush1.msra.mxu0 0.0
    %298 = vmatprep.subr.mxu0 0.0
    %299 = vmatpush1.msra.mxu0 0.0
    %300 = vmatprep.subr.mxu0 0.0
    %301 = vmatpush1.msra.mxu0 0.0
    %302 = vmatprep.subr.mxu0 0.0
    %303 = vmatpush1.msra.mxu0 0.0
    %304 = vmatprep.subr.mxu0 0.0
    %305 = vmatpush1.msra.mxu0 0.0
    %306 = vmatprep.subr.mxu0 0.0
    %307 = vmatpush1.msra.mxu0 0.0
    %308 = vmatprep.subr.mxu0 0.0
    %309 = vmatpush1.msra.mxu0 0.0
    %310 = vmatprep.subr.mxu0 0.0
    %311 = vmatpush1.msra.mxu0 0.0
    %312 = vmatprep.subr.mxu0 0.0
    %313 = vmatpush1.msra.mxu0 0.0
    %314 = vmatprep.subr.mxu0 0.0
    %315 = vmatpush1.msra.mxu0 0.0
    %316 = vmatprep.subr.mxu0 0.0
    %317 = vmatpush1.msra.mxu0 0.0
    %318 = vmatprep.subr.mxu0 0.0
    %319 = vmatpush1.msra.mxu0 0.0
    %320 = vmatprep.subr.mxu0 0.0
    %321 = vmatpush1.msra.mxu0 0.0
    %322 = vmatprep.subr.mxu0 0.0
    %323 = vmatpush1.msra.mxu0 0.0
    %324 = vmatprep.subr.mxu0 0.0
    %325 = vmatpush1.msra.mxu0 0.0
    %326 = vmatprep.mubr.f32.mxu0 0.0
    %327 = vmatmul.mubr.f32.gmra.mrb[0].mxu0 %v254
    %v328 = vpop.f32.mrb[0].mxu0
    %v329 = vadd.f32 0.0, %v328
    %v330 = vpop.f32.mrb[0].mxu0
    %v331 = vadd.f32 0.0, %v330
    %332 = vdwg.mxu0
    %v333 = vadd.f32 %v232, %v329
    %v334 = vadd.f32 %v234, %v331
    %v335 = vld [vmem:[%s2] sm:$0xff]
    %337 = vset.pattern.permute.xlu0 0
    %338 = vperm.xlu0 %337, %v335
    %v339 = vpop.permute.xlu0 %338
    %v341 = vadd.f32 %v333, %v339
    %v342 = vadd.f32 %v334, %v339
    %v343 = vmax.f32 %v341, 0.0
    %v344 = vmax.f32 %v342, 0.0
    %s345 = scalar_lea.vmem %s3, 16
    %v346 = vld [vmem:[%s345] sm:$0xff]
    %347 = vrot.lane.b32.xlu0 %v343, 4
    %v348 = vpop.permute.xlu0 %347
    %349 = vrot.lane.b32.xlu0 %v344, 4
    %v350 = vpop.permute.xlu0 %349
    %v351 = vsel %vm64, %v348, %v350
    %v352 = vsel %vm64, %v350, %v348
    %v353 = vsel %vm71, %v352, 0.0
    %v354 = vsel %vm72, %v351, 0.0
    %v355 = vld [vmem:[%s3] sm:$0xff]
    %vm356 = vcmask 64512
    %v358 = vsel %vm356, %v355, 0
    %360 = vmatprep.subr.mxu0 %v354
    %361 = vmatpush1.msra.mxu0 %v353
    %362 = vmatprep.subr.mxu0 0.0
    %363 = vmatpush1.msra.mxu0 0.0
    %364 = vmatprep.subr.mxu0 0.0
    %365 = vmatpush1.msra.mxu0 0.0
    %366 = vmatprep.subr.mxu0 0.0
    %367 = vmatpush1.msra.mxu0 0.0
    %368 = vmatprep.subr.mxu0 0.0
    %369 = vmatpush1.msra.mxu0 0.0
    %370 = vmatprep.subr.mxu0 0.0
    %371 = vmatpush1.msra.mxu0 0.0
    %372 = vmatprep.subr.mxu0 0.0
    %373 = vmatpush1.msra.mxu0 0.0
    %374 = vmatprep.subr.mxu0 0.0
    %375 = vmatpush1.msra.mxu0 0.0
    %376 = vmatprep.subr.mxu0 0.0
    %377 = vmatpush1.msra.mxu0 0.0
    %378 = vmatprep.subr.mxu0 0.0
    %379 = vmatpush1.msra.mxu0 0.0
    %380 = vmatprep.subr.mxu0 0.0
    %381 = vmatpush1.msra.mxu0 0.0
    %382 = vmatprep.subr.mxu0 0.0
    %383 = vmatpush1.msra.mxu0 0.0
    %384 = vmatprep.subr.mxu0 0.0
    %385 = vmatpush1.msra.mxu0 0.0
    %386 = vmatprep.subr.mxu0 0.0
    %387 = vmatpush1.msra.mxu0 0.0
    %388 = vmatprep.subr.mxu0 0.0
    %389 = vmatpush1.msra.mxu0 0.0
    %390 = vmatprep.subr.mxu0 0.0
    %391 = vmatpush1.msra.mxu0 0.0
    %392 = vmatprep.subr.mxu0 0.0
    %393 = vmatpush1.msra.mxu0 0.0
    %394 = vmatprep.subr.mxu0 0.0
    %395 = vmatpush1.msra.mxu0 0.0
    %396 = vmatprep.subr.mxu0 0.0
    %397 = vmatpush1.msra.mxu0 0.0
    %398 = vmatprep.subr.mxu0 0.0
    %399 = vmatpush1.msra.mxu0 0.0
    %400 = vmatprep.subr.mxu0 0.0
    %401 = vmatpush1.msra.mxu0 0.0
    %402 = vmatprep.subr.mxu0 0.0
    %403 = vmatpush1.msra.mxu0 0.0
    %404 = vmatprep.subr.mxu0 0.0
    %405 = vmatpush1.msra.mxu0 0.0
    %406 = vmatprep.subr.mxu0 0.0
    %407 = vmatpush1.msra.mxu0 0.0
    %408 = vmatprep.subr.mxu0 0.0
    %409 = vmatpush1.msra.mxu0 0.0
    %410 = vmatprep.subr.mxu0 0.0
    %411 = vmatpush1.msra.mxu0 0.0
    %412 = vmatprep.subr.mxu0 0.0
    %413 = vmatpush1.msra.mxu0 0.0
    %414 = vmatprep.subr.mxu0 0.0
    %415 = vmatpush1.msra.mxu0 0.0
    %416 = vmatprep.subr.mxu0 0.0
    %417 = vmatpush1.msra.mxu0 0.0
    %418 = vmatprep.subr.mxu0 0.0
    %419 = vmatpush1.msra.mxu0 0.0
    %420 = vmatprep.subr.mxu0 0.0
    %421 = vmatpush1.msra.mxu0 0.0
    %422 = vmatprep.subr.mxu0 0.0
    %423 = vmatpush1.msra.mxu0 0.0
    %424 = vmatprep.mubr.f32.mxu0 0.0
    %425 = vmatmul.mubr.f32.gmra.mrb[0].mxu0 %v358
    %v426 = vpop.f32.mrb[0].mxu0
    %v427 = vadd.f32 0.0, %v426
    %v428 = vpop.f32.mrb[0].mxu0
    %v429 = vadd.f32 0.0, %v428
    %430 = vdwg.mxu0
    %v432 = vsel %vm356, %v346, 0
    %434 = vmatprep.subr.mxu0 %v344
    %435 = vmatpush1.msra.mxu0 %v343
    %436 = vmatprep.subr.mxu0 0.0
    %437 = vmatpush1.msra.mxu0 0.0
    %438 = vmatprep.subr.mxu0 0.0
    %439 = vmatpush1.msra.mxu0 0.0
    %440 = vmatprep.subr.mxu0 0.0
    %441 = vmatpush1.msra.mxu0 0.0
    %442 = vmatprep.subr.mxu0 0.0
    %443 = vmatpush1.msra.mxu0 0.0
    %444 = vmatprep.subr.mxu0 0.0
    %445 = vmatpush1.msra.mxu0 0.0
    %446 = vmatprep.subr.mxu0 0.0
    %447 = vmatpush1.msra.mxu0 0.0
    %448 = vmatprep.subr.mxu0 0.0
    %449 = vmatpush1.msra.mxu0 0.0
    %450 = vmatprep.subr.mxu0 0.0
    %451 = vmatpush1.msra.mxu0 0.0
    %452 = vmatprep.subr.mxu0 0.0
    %453 = vmatpush1.msra.mxu0 0.0
    %454 = vmatprep.subr.mxu0 0.0
    %455 = vmatpush1.msra.mxu0 0.0
    %456 = vmatprep.subr.mxu0 0.0
    %457 = vmatpush1.msra.mxu0 0.0
    %458 = vmatprep.subr.mxu0 0.0
    %459 = vmatpush1.msra.mxu0 0.0
    %460 = vmatprep.subr.mxu0 0.0
    %461 = vmatpush1.msra.mxu0 0.0
    %462 = vmatprep.subr.mxu0 0.0
    %463 = vmatpush1.msra.mxu0 0.0
    %464 = vmatprep.subr.mxu0 0.0
    %465 = vmatpush1.msra.mxu0 0.0
    %466 = vmatprep.subr.mxu0 0.0
    %467 = vmatpush1.msra.mxu0 0.0
    %468 = vmatprep.subr.mxu0 0.0
    %469 = vmatpush1.msra.mxu0 0.0
    %470 = vmatprep.subr.mxu0 0.0
    %471 = vmatpush1.msra.mxu0 0.0
    %472 = vmatprep.subr.mxu0 0.0
    %473 = vmatpush1.msra.mxu0 0.0
    %474 = vmatprep.subr.mxu0 0.0
    %475 = vmatpush1.msra.mxu0 0.0
    %476 = vmatprep.subr.mxu0 0.0
    %477 = vmatpush1.msra.mxu0 0.0
    %478 = vmatprep.subr.mxu0 0.0
    %479 = vmatpush1.msra.mxu0 0.0
    %480 = vmatprep.subr.mxu0 0.0
    %481 = vmatpush1.msra.mxu0 0.0
    %482 = vmatprep.subr.mxu0 0.0
    %483 = vmatpush1.msra.mxu0 0.0
    %484 = vmatprep.subr.mxu0 0.0
    %485 = vmatpush1.msra.mxu0 0.0
    %486 = vmatprep.subr.mxu0 0.0
    %487 = vmatpush1.msra.mxu0 0.0
    %488 = vmatprep.subr.mxu0 0.0
    %489 = vmatpush1.msra.mxu0 0.0
    %490 = vmatprep.subr.mxu0 0.0
    %491 = vmatpush1.msra.mxu0 0.0
    %492 = vmatprep.subr.mxu0 0.0
    %493 = vmatpush1.msra.mxu0 0.0
    %494 = vmatprep.subr.mxu0 0.0
    %495 = vmatpush1.msra.mxu0 0.0
    %496 = vmatprep.subr.mxu0 0.0
    %497 = vmatpush1.msra.mxu0 0.0
    %498 = vmatprep.mubr.f32.mxu0 0.0
    %499 = vmatmul.mubr.f32.gmra.mrb[0].mxu0 %v432
    %v500 = vpop.f32.mrb[0].mxu0
    %v501 = vadd.f32 %v427, %v500
    %v502 = vpop.f32.mrb[0].mxu0
    %v503 = vadd.f32 %v429, %v502
    %504 = vdwg.mxu0
    %505 = vrot.lane.b32.xlu0 %v343, 2
    %v506 = vpop.permute.xlu0 %505
    %507 = vrot.lane.b32.xlu0 %v344, 2
    %v508 = vpop.permute.xlu0 %507
    %v509 = vsel %vm240, %v506, %v508
    %v510 = vsel %vm240, %v508, %v506
    %v511 = vsel %vm247, %v510, 0.0
    %v512 = vsel %vm248, %v509, 0.0
    %s513 = scalar_lea.vmem %s3, 8
    %v514 = vld [vmem:[%s513] sm:$0xff]
    %v516 = vsel %vm356, %v514, 0
    %518 = vmatprep.subr.mxu0 %v512
    %519 = vmatpush1.msra.mxu0 %v511
    %520 = vmatprep.subr.mxu0 0.0
    %521 = vmatpush1.msra.mxu0 0.0
    %522 = vmatprep.subr.mxu0 0.0
    %523 = vmatpush1.msra.mxu0 0.0
    %524 = vmatprep.subr.mxu0 0.0
    %525 = vmatpush1.msra.mxu0 0.0
    %526 = vmatprep.subr.mxu0 0.0
    %527 = vmatpush1.msra.mxu0 0.0
    %528 = vmatprep.subr.mxu0 0.0
    %529 = vmatpush1.msra.mxu0 0.0
    %530 = vmatprep.subr.mxu0 0.0
    %531 = vmatpush1.msra.mxu0 0.0
    %532 = vmatprep.subr.mxu0 0.0
    %533 = vmatpush1.msra.mxu0 0.0
    %534 = vmatprep.subr.mxu0 0.0
    %535 = vmatpush1.msra.mxu0 0.0
    %536 = vmatprep.subr.mxu0 0.0
    %537 = vmatpush1.msra.mxu0 0.0
    %538 = vmatprep.subr.mxu0 0.0
    %539 = vmatpush1.msra.mxu0 0.0
    %540 = vmatprep.subr.mxu0 0.0
    %541 = vmatpush1.msra.mxu0 0.0
    %542 = vmatprep.subr.mxu0 0.0
    %543 = vmatpush1.msra.mxu0 0.0
    %544 = vmatprep.subr.mxu0 0.0
    %545 = vmatpush1.msra.mxu0 0.0
    %546 = vmatprep.subr.mxu0 0.0
    %547 = vmatpush1.msra.mxu0 0.0
    %548 = vmatprep.subr.mxu0 0.0
    %549 = vmatpush1.msra.mxu0 0.0
    %550 = vmatprep.subr.mxu0 0.0
    %551 = vmatpush1.msra.mxu0 0.0
    %552 = vmatprep.subr.mxu0 0.0
    %553 = vmatpush1.msra.mxu0 0.0
    %554 = vmatprep.subr.mxu0 0.0
    %555 = vmatpush1.msra.mxu0 0.0
    %556 = vmatprep.subr.mxu0 0.0
    %557 = vmatpush1.msra.mxu0 0.0
    %558 = vmatprep.subr.mxu0 0.0
    %559 = vmatpush1.msra.mxu0 0.0
    %560 = vmatprep.subr.mxu0 0.0
    %561 = vmatpush1.msra.mxu0 0.0
    %562 = vmatprep.subr.mxu0 0.0
    %563 = vmatpush1.msra.mxu0 0.0
    %564 = vmatprep.subr.mxu0 0.0
    %565 = vmatpush1.msra.mxu0 0.0
    %566 = vmatprep.subr.mxu0 0.0
    %567 = vmatpush1.msra.mxu0 0.0
    %568 = vmatprep.subr.mxu0 0.0
    %569 = vmatpush1.msra.mxu0 0.0
    %570 = vmatprep.subr.mxu0 0.0
    %571 = vmatpush1.msra.mxu0 0.0
    %572 = vmatprep.subr.mxu0 0.0
    %573 = vmatpush1.msra.mxu0 0.0
    %574 = vmatprep.subr.mxu0 0.0
    %575 = vmatpush1.msra.mxu0 0.0
    %576 = vmatprep.subr.mxu0 0.0
    %577 = vmatpush1.msra.mxu0 0.0
    %578 = vmatprep.subr.mxu0 0.0
    %579 = vmatpush1.msra.mxu0 0.0
    %580 = vmatprep.subr.mxu0 0.0
    %581 = vmatpush1.msra.mxu0 0.0
    %582 = vmatprep.mubr.f32.mxu0 0.0
    %583 = vmatmul.mubr.f32.gmra.mrb[0].mxu0 %v516
    %v584 = vpop.f32.mrb[0].mxu0
    %v585 = vadd.f32 0.0, %v584
    %v586 = vpop.f32.mrb[0].mxu0
    %v587 = vadd.f32 0.0, %v586
    %588 = vdwg.mxu0
    %v589 = vadd.f32 %v501, %v585
    %v590 = vadd.f32 %v503, %v587
    %v591 = vld [vmem:[%s4] sm:$0xff]
    %593 = vset.pattern.permute.xlu0 0
    %594 = vperm.xlu0 %593, %v591
    %v595 = vpop.permute.xlu0 %594
    %v597 = vadd.f32 %v589, %v595
    %v598 = vadd.f32 %v590, %v595
    %v599 = vmax.f32 %v597, 0.0
    %v600 = vmax.f32 %v598, 0.0
    %v601 = vld [vmem:[%s5] sm:$0xff]
    %v603 = vsel %vm76, %v601, 0
    %605 = vmatprep.subr.mxu0 %v163
    %606 = vmatpush1.msra.mxu0 %v161
    %607 = vmatprep.subr.mxu0 0.0
    %608 = vmatpush1.msra.mxu0 0.0
    %609 = vmatprep.subr.mxu0 0.0
    %610 = vmatpush1.msra.mxu0 0.0
    %611 = vmatprep.subr.mxu0 0.0
    %612 = vmatpush1.msra.mxu0 0.0
    %613 = vmatprep.subr.mxu0 0.0
    %614 = vmatpush1.msra.mxu0 0.0
    %615 = vmatprep.subr.mxu0 0.0
    %616 = vmatpush1.msra.mxu0 0.0
    %617 = vmatprep.subr.mxu0 0.0
    %618 = vmatpush1.msra.mxu0 0.0
    %619 = vmatprep.subr.mxu0 0.0
    %620 = vmatpush1.msra.mxu0 0.0
    %621 = vmatprep.subr.mxu0 0.0
    %622 = vmatpush1.msra.mxu0 0.0
    %623 = vmatprep.subr.mxu0 0.0
    %624 = vmatpush1.msra.mxu0 0.0
    %625 = vmatprep.subr.mxu0 0.0
    %626 = vmatpush1.msra.mxu0 0.0
    %627 = vmatprep.subr.mxu0 0.0
    %628 = vmatpush1.msra.mxu0 0.0
    %629 = vmatprep.subr.mxu0 0.0
    %630 = vmatpush1.msra.mxu0 0.0
    %631 = vmatprep.subr.mxu0 0.0
    %632 = vmatpush1.msra.mxu0 0.0
    %633 = vmatprep.subr.mxu0 0.0
    %634 = vmatpush1.msra.mxu0 0.0
    %635 = vmatprep.subr.mxu0 0.0
    %636 = vmatpush1.msra.mxu0 0.0
    %637 = vmatprep.subr.mxu0 0.0
    %638 = vmatpush1.msra.mxu0 0.0
    %639 = vmatprep.subr.mxu0 0.0
    %640 = vmatpush1.msra.mxu0 0.0
    %641 = vmatprep.subr.mxu0 0.0
    %642 = vmatpush1.msra.mxu0 0.0
    %643 = vmatprep.subr.mxu0 0.0
    %644 = vmatpush1.msra.mxu0 0.0
    %645 = vmatprep.subr.mxu0 0.0
    %646 = vmatpush1.msra.mxu0 0.0
    %647 = vmatprep.subr.mxu0 0.0
    %648 = vmatpush1.msra.mxu0 0.0
    %649 = vmatprep.subr.mxu0 0.0
    %650 = vmatpush1.msra.mxu0 0.0
    %651 = vmatprep.subr.mxu0 0.0
    %652 = vmatpush1.msra.mxu0 0.0
    %653 = vmatprep.subr.mxu0 0.0
    %654 = vmatpush1.msra.mxu0 0.0
    %655 = vmatprep.subr.mxu0 0.0
    %656 = vmatpush1.msra.mxu0 0.0
    %657 = vmatprep.subr.mxu0 0.0
    %658 = vmatpush1.msra.mxu0 0.0
    %659 = vmatprep.subr.mxu0 0.0
    %660 = vmatpush1.msra.mxu0 0.0
    %661 = vmatprep.subr.mxu0 0.0
    %662 = vmatpush1.msra.mxu0 0.0
    %663 = vmatprep.subr.mxu0 0.0
    %664 = vmatpush1.msra.mxu0 0.0
    %665 = vmatprep.subr.mxu0 0.0
    %666 = vmatpush1.msra.mxu0 0.0
    %667 = vmatprep.subr.mxu0 0.0
    %668 = vmatpush1.msra.mxu0 0.0
    %669 = vmatprep.mubr.f32.mxu0 0.0
    %670 = vmatmul.mubr.f32.gmra.mrb[0].mxu0 %v603
    %v671 = vpop.f32.mrb[0].mxu0
    %v672 = vadd.f32 0.0, %v671
    %v673 = vpop.f32.mrb[0].mxu0
    %v674 = vadd.f32 0.0, %v673
    %675 = vdwg.mxu0
    %v676 = vadd.f32 %v599, %v672
    %v677 = vadd.f32 %v600, %v674
    %v678 = vld [vmem:[%s6] sm:$0xff]
    %680 = vset.pattern.permute.xlu0 0
    %681 = vperm.xlu0 %680, %v678
    %v682 = vpop.permute.xlu0 %681
    %v684 = vadd.f32 %v676, %v682
    %v685 = vadd.f32 %v677, %v682
    %686 = vst [vmem:[#allocation2] sm:$0xff] %v684
    %687 = vst [vmem:[#allocation2 + $0x8] sm:$0xff] %v685
    // Predicated region
    $region30: #{tpu_custom_call.1} parent=1 // pred_check
      _
    $region31: #{tpu_custom_call.1} parent=1 // pred_check_branch
      %689 = sbr.rel (0) target = $region33
    $region32: #{tpu_custom_call.1} parent=1 // pred_region
      %s691 = ssub.s32 256, 256
      %692 = vsyncadd [#allocation3], %s691
      %s694 = sshll.u32 [#allocation2], 4
      %s695 = int_to_ptr.vmem [resolvable:$true] %s694
      %697 = dma.vmem_to_hbm [thread:$0]  %s695, 256, %s7, [#allocation3]
    $region33: #{tpu_custom_call.1} parent=1 // pred_fallthru
      _
    // Predicated region
    $region34: #{tpu_custom_call.1} parent=1 // pred_check
      _
    $region35: #{tpu_custom_call.1} parent=1 // pred_check_branch
      %699 = sbr.rel (0) target = $region37
    $region36: #{tpu_custom_call.1} parent=1 // pred_region
      %700 = dma.done [#allocation3], 256
    $region37: #{tpu_custom_call.1} parent=1 // pred_fallthru
      _
    %701 = vsyncpa [#allocation3], 1

</llo_original>
